<compile_context>
chip_gen: v5e
topology: v5e:2x2
jax: 0.10.0
libtpu: 0.0.40
codegen_flags: <defaults>
</compile_context>

<pallas_src>
import functools

import jax
import jax.numpy as jnp
from jax.experimental import pallas as pl
from jax.experimental.pallas import tpu as pltpu


# ----------------------------------------------------------------------------
# helpers
# ----------------------------------------------------------------------------
def _round_up(x, m):
    return ((x + m - 1) // m) * m


def _tile(dim, target):
    """(tile, padded_dim) for one matmul axis; full extent if it fits one tile."""
    if dim <= target:
        return dim, dim
    return target, _round_up(dim, target)


# ----------------------------------------------------------------------------
# tiled matmul kernels:  y = x @ w + b   (bf16 MXU operands, f32 accumulation)
# ----------------------------------------------------------------------------
def _matmul_kernel_f32_out(x_ref, w_ref, b_ref, o_ref):
    # o_ref is f32 and resident across the k axis -> accumulate into it directly.
    @pl.when(pl.program_id(2) == 0)
    def _init():
        o_ref[...] = jnp.broadcast_to(b_ref[...], o_ref.shape)

    o_ref[...] += jnp.dot(x_ref[...], w_ref[...], preferred_element_type=jnp.float32)


def _matmul_kernel_bf16_out(x_ref, w_ref, b_ref, o_ref, acc_ref):
    # bf16 output: keep an f32 accumulator, cast once at the last k step.
    @pl.when(pl.program_id(2) == 0)
    def _init():
        acc_ref[...] = jnp.zeros_like(acc_ref)

    acc_ref[...] += jnp.dot(x_ref[...], w_ref[...], preferred_element_type=jnp.float32)

    @pl.when(pl.program_id(2) == pl.num_programs(2) - 1)
    def _finalize():
        o_ref[...] = (acc_ref[...] + b_ref[...]).astype(o_ref.dtype)


def pallas_matmul(x, w, b=None, *, out_dtype=jnp.float32, tm_t=512, tn_t=512, tk_t=256):
    """y = x @ w + b.  x: (M, K), w: (K, N) (bf16 preferred), b: (N,) f32 or None."""
    M, K = x.shape
    K2, N = w.shape
    assert K == K2
    tm, Mp = _tile(M, tm_t)
    tk, Kp = _tile(K, tk_t)          # tk_t=256 divides common transformer K -> no pad
    tn, Np = _tile(N, tn_t)

    xb = x if x.dtype == jnp.bfloat16 else x.astype(jnp.bfloat16)
    wb = w if w.dtype == jnp.bfloat16 else w.astype(jnp.bfloat16)
    if (Mp, Kp) != (M, K):
        xb = jnp.pad(xb, ((0, Mp - M), (0, Kp - K)))
    if (Kp, Np) != (K, N):
        wb = jnp.pad(wb, ((0, Kp - K), (0, Np - N)))
    if b is None:
        bp = jnp.zeros((1, Np), jnp.float32)
    else:
        bp = b.astype(jnp.float32).reshape(1, N)
        if Np != N:
            bp = jnp.pad(bp, ((0, 0), (0, Np - N)))

    f32_out = out_dtype == jnp.float32
    kernel = _matmul_kernel_f32_out if f32_out else _matmul_kernel_bf16_out
    scratch = [] if f32_out else [pltpu.VMEM((tm, tn), jnp.float32)]

    grid = (Mp // tm, Np // tn, Kp // tk)
    out = pl.pallas_call(
        kernel,
        grid=grid,
        in_specs=[
            pl.BlockSpec((tm, tk), lambda i, j, k: (i, k)),
            pl.BlockSpec((tk, tn), lambda i, j, k: (k, j)),
            pl.BlockSpec((1, tn), lambda i, j, k: (0, j)),
        ],
        out_specs=pl.BlockSpec((tm, tn), lambda i, j, k: (i, j)),
        out_shape=jax.ShapeDtypeStruct((Mp, Np), out_dtype),
        scratch_shapes=scratch,
        compiler_params=pltpu.CompilerParams(
            dimension_semantics=("parallel", "parallel", "arbitrary"),
        ),
    )(xb, wb, bp)
    if (Mp, Np) != (M, N):
        out = out[:M, :N]
    return out


# ----------------------------------------------------------------------------
# fused attention kernel
#   consumes the (B, N, 3C) qkv buffer directly (q columns pre-scaled in the
#   weights), loops heads in-kernel, writes a lane-dense (B, N, C) bf16 output.
# ----------------------------------------------------------------------------
def _attention_kernel(qkv_ref, o_ref, *, num_heads, head_dim):
    C = num_heads * head_dim
    for h in range(num_heads):
        lo = h * head_dim
        q = qkv_ref[0, :, lo:lo + head_dim]                    # (N, D) bf16, pre-scaled
        k = qkv_ref[0, :, C + lo:C + lo + head_dim]            # (N, D) bf16
        v = qkv_ref[0, :, 2 * C + lo:2 * C + lo + head_dim]    # (N, D) bf16
        # scores = q @ k^T  (contract last dims; no explicit transpose)
        s = jax.lax.dot_general(q, k, (((1,), (1,)), ((), ())),
                                preferred_element_type=jnp.float32)   # (N, N) f32
        m = jnp.max(s, axis=-1, keepdims=True)
        e = jnp.exp(s - m)
        denom = jnp.sum(e, axis=-1, keepdims=True)
        # Deferred normalization: (e @ v) * 1/denom  (N x D multiply, EUP reciprocal)
        o = jnp.dot(e.astype(v.dtype), v, preferred_element_type=jnp.float32)  # (N, D)
        o = o * pl.reciprocal(denom, approx=True)
        o_ref[0, :, lo:lo + head_dim] = o.astype(o_ref.dtype)


def fused_attention(qkv, num_heads):
    """qkv: (B, N, 3C) bf16, q columns pre-scaled. Returns (B, N, C) bf16."""
    B, N, C3 = qkv.shape
    C = C3 // 3
    D = C // num_heads
    # TODO(synk): for long sequences / many heads, tile KV flash-style (online
    # softmax) and split heads/q-tiles across the grid to bound the (N, N) score
    # temporaries within v7x's 64 MiB VMEM and give the pipeline more depth.
    kernel = functools.partial(_attention_kernel, num_heads=num_heads, head_dim=D)
    return pl.pallas_call(
        kernel,
        grid=(B,),
        in_specs=[pl.BlockSpec((1, N, C3), lambda b: (b, 0, 0))],
        out_specs=pl.BlockSpec((1, N, C), lambda b: (b, 0, 0)),
        out_shape=jax.ShapeDtypeStruct((B, N, C), jnp.bfloat16),
        compiler_params=pltpu.CompilerParams(
            dimension_semantics=("parallel",),
            vmem_limit_bytes=64 * 1024 * 1024,
        ),
    )(qkv)


# ----------------------------------------------------------------------------
# param prep + Attention forward
# ----------------------------------------------------------------------------
def prepare_params(raw, num_heads):
    """Fold the softmax scale into q-columns of qkv_w/b; store weights as bf16."""
    C = raw["qkv_w"].shape[0]
    D = C // num_heads
    scale = D ** (-0.5)
    qkv_w = jnp.asarray(raw["qkv_w"], jnp.float32).at[:, :C].multiply(scale)
    params = {
        "qkv_w": qkv_w.astype(jnp.bfloat16),
        "proj_w": jnp.asarray(raw["proj_w"], jnp.float32).astype(jnp.bfloat16),
        "proj_b": jnp.asarray(raw["proj_b"], jnp.float32),
    }
    if raw.get("qkv_b") is not None:
        params["qkv_b"] = jnp.asarray(raw["qkv_b"], jnp.float32).at[:C].multiply(scale)
    else:
        params["qkv_b"] = None
    return params


def attention_fwd(params, x, num_heads):
    """x: (B, N, C) f32. Matches torch `Attention.forward` (dropout p=0)."""
    B, N, C = x.shape
    qkv = pallas_matmul(x.reshape(B * N, C), params["qkv_w"], params["qkv_b"],
                        out_dtype=jnp.bfloat16)                 # (B*N, 3C) bf16
    o = fused_attention(qkv.reshape(B, N, 3 * C), num_heads)    # (B, N, C) bf16
    out = pallas_matmul(o.reshape(B * N, C), params["proj_w"], params["proj_b"],
                        out_dtype=jnp.float32)
    # attn_drop / proj_drop: p = 0.0 -> identity (inference); intentionally omitted.
    return out.reshape(B, N, C)


# pure-JAX f32 reference (tolerance check only) — uses the RAW (unscaled) params
def attention_ref(raw, x, num_heads):
    B, N, C = x.shape
    D = C // num_heads
    scale = D ** (-0.5)
    qkv = x @ raw["qkv_w"]
    if raw.get("qkv_b") is not None:
        qkv = qkv + raw["qkv_b"]
    qkv = qkv.reshape(B, N, 3, num_heads, D).transpose(2, 0, 3, 1, 4)
    q, k, v = qkv[0], qkv[1], qkv[2]
    attn = jnp.einsum("bhqd,bhkd->bhqk", q, k) * scale
    attn = jax.nn.softmax(attn, axis=-1)
    o = jnp.einsum("bhqk,bhkd->bhqd", attn, v)
    o = o.transpose(0, 2, 1, 3).reshape(B, N, C)
    return o @ raw["proj_w"] + raw["proj_b"]


# ----------------------------------------------------------------------------
# main
# ----------------------------------------------------------------------------
if __name__ == "__main__":
    B, N, C, num_heads = 2, 8, 32, 4          # dim=32, 4 heads, head_dim=8

    key = jax.random.PRNGKey(0)
    kx, kqkv, kproj = jax.random.split(key, 3)
    x = jax.random.normal(kx, (B, N, C), jnp.float32)

    raw = {
        "qkv_w": jax.random.normal(kqkv, (C, 3 * C), jnp.float32) * 0.02,
        "qkv_b": None,                        # module default: qkv_bias=False
        "proj_w": jax.random.normal(kproj, (C, C), jnp.float32) * 0.02,
        "proj_b": jnp.zeros((C,), jnp.float32),
    }
    params = prepare_params(raw, num_heads)

    run = jax.jit(functools.partial(attention_fwd, num_heads=num_heads))
    out = jax.block_until_ready(run(params, x))

    ref = attention_ref(raw, x, num_heads)
    assert out.shape == (B, N, C)
    assert bool(jnp.all(jnp.isfinite(out)))
    max_err = float(jnp.max(jnp.abs(out - ref)))
    assert bool(jnp.allclose(out, ref, atol=3e-3, rtol=2e-2)), max_err
    print("KERNEL_OK")
</pallas_src>

<mosaic_0001>
module attributes {stable_mosaic.version = 11 : i64} {
  func.func @_matmul_kernel_bf16_out(%arg0: i32, %arg1: i32, %arg2: i32, %arg3: memref<16x32xbf16, #tpu.memory_space<vmem>>, %arg4: memref<32x96xbf16, #tpu.memory_space<vmem>>, %arg5: memref<1x96xf32, #tpu.memory_space<vmem>>, %arg6: memref<16x96xbf16, #tpu.memory_space<vmem>>, %arg7: memref<16x96xf32, #tpu.memory_space<vmem>>) attributes {dimension_semantics = [#tpu.dimension_semantics<parallel>, #tpu.dimension_semantics<parallel>, #tpu.dimension_semantics<arbitrary>], iteration_bounds = array<i64: 1, 1, 1>, scalar_prefetch = 0 : i64, scratch_operands = 1 : i64, tpu.core_type = #tpu.core_type<tc>, window_params = [{transform_indices = @transform_0, window_bounds = array<i64: 16, 32>}, {transform_indices = @transform_1, window_bounds = array<i64: 32, 96>}, {transform_indices = @transform_2, window_bounds = array<i64: 1, 96>}, {transform_indices = @transform_3, window_bounds = array<i64: 16, 96>}]} {
    %c0_i32 = arith.constant 0 : i32
    %0 = arith.cmpi eq, %arg2, %c0_i32 : i32
    %1 = arith.extui %0 : i1 to i32
    %c0_i32_0 = arith.constant 0 : i32
    %2 = arith.cmpi ne, %1, %c0_i32_0 : i32
    scf.if %2 {
      %cst_10 = arith.constant 0.000000e+00 : f32
      %12 = vector.broadcast %cst_10 : f32 to vector<16x96xf32>
      %c0_11 = arith.constant 0 : index
      %c0_12 = arith.constant 0 : index
      %13 = vector.load %arg7[%c0_11, %c0_12] : memref<16x96xf32, #tpu.memory_space<vmem>>, vector<16x96xf32>
      tpu.vector_store %arg7[%c0_11, %c0_12], %12 {strides = array<i32>} : memref<16x96xf32, #tpu.memory_space<vmem>>, vector<16x96xf32>,
    } else {
    }
    %c0 = arith.constant 0 : index
    %c0_1 = arith.constant 0 : index
    %3 = vector.load %arg7[%c0, %c0_1] : memref<16x96xf32, #tpu.memory_space<vmem>>, vector<16x96xf32>
    %c0_2 = arith.constant 0 : index
    %c0_3 = arith.constant 0 : index
    %4 = vector.load %arg3[%c0_2, %c0_3] : memref<16x32xbf16, #tpu.memory_space<vmem>>, vector<16x32xbf16>
    %c0_4 = arith.constant 0 : index
    %c0_5 = arith.constant 0 : index
    %5 = vector.load %arg4[%c0_4, %c0_5] : memref<32x96xbf16, #tpu.memory_space<vmem>>, vector<32x96xbf16>
    %cst = arith.constant dense<0.000000e+00> : vector<16x96xf32>
    %6 = tpu.matmul %4, %5, %cst {dimension_numbers = #tpu.dot_dimension_numbers<[1], [0], [0], [1], [0, 0, 1, 1], [], []>} : vector<16x32xbf16>, vector<32x96xbf16>, vector<16x96xf32> -> vector<16x96xf32>
    %7 = arith.addf %3, %6 : vector<16x96xf32>
    %c0_6 = arith.constant 0 : index
    %c0_7 = arith.constant 0 : index
    %8 = vector.load %arg7[%c0_6, %c0_7] : memref<16x96xf32, #tpu.memory_space<vmem>>, vector<16x96xf32>
    tpu.vector_store %arg7[%c0_6, %c0_7], %7 {strides = array<i32>} : memref<16x96xf32, #tpu.memory_space<vmem>>, vector<16x96xf32>,
    %c0_i32_8 = arith.constant 0 : i32
    %9 = arith.cmpi eq, %arg2, %c0_i32_8 : i32
    %10 = arith.extui %9 : i1 to i32
    %c0_i32_9 = arith.constant 0 : i32
    %11 = arith.cmpi ne, %10, %c0_i32_9 : i32
    scf.if %11 {
      %c0_10 = arith.constant 0 : index
      %c0_11 = arith.constant 0 : index
      %12 = vector.load %arg7[%c0_10, %c0_11] : memref<16x96xf32, #tpu.memory_space<vmem>>, vector<16x96xf32>
      %c0_12 = arith.constant 0 : index
      %c0_13 = arith.constant 0 : index
      %13 = vector.load %arg5[%c0_12, %c0_13] : memref<1x96xf32, #tpu.memory_space<vmem>>, vector<1x96xf32>
      %14 = vector.broadcast %13 : vector<1x96xf32> to vector<16x96xf32>
      %15 = arith.addf %12, %14 : vector<16x96xf32>
      %16 = arith.truncf %15 : vector<16x96xf32> to vector<16x96xbf16>
      %c0_14 = arith.constant 0 : index
      %c0_15 = arith.constant 0 : index
      %17 = vector.load %arg6[%c0_14, %c0_15] : memref<16x96xbf16, #tpu.memory_space<vmem>>, vector<16x96xbf16>
      tpu.vector_store %arg6[%c0_14, %c0_15], %16 {strides = array<i32>} : memref<16x96xbf16, #tpu.memory_space<vmem>>, vector<16x96xbf16>,
    } else {
    }
    return
  }
  func.func @transform_0(%arg0: i32, %arg1: i32, %arg2: i32) -> (i32, i32) {
    %c0_i32 = arith.constant 0 : i32
    return %arg0, %arg2 : i32, i32
  }
  func.func @transform_1(%arg0: i32, %arg1: i32, %arg2: i32) -> (i32, i32) {
    %c0_i32 = arith.constant 0 : i32
    return %arg2, %arg1 : i32, i32
  }
  func.func @transform_2(%arg0: i32, %arg1: i32, %arg2: i32) -> (i32, i32) {
    %c0_i32 = arith.constant 0 : i32
    %c0_i32_0 = arith.constant 0 : i32
    return %c0_i32, %arg1 : i32, i32
  }
  func.func @transform_3(%arg0: i32, %arg1: i32, %arg2: i32) -> (i32, i32) {
    %c0_i32 = arith.constant 0 : i32
    return %arg0, %arg1 : i32, i32
  }
}

module attributes {stable_mosaic.version = 11 : i64} {
  func.func @_attention_kernel(%arg0: i32, %arg1: memref<1x8x96xbf16, #tpu.memory_space<vmem>>, %arg2: memref<1x8x32xbf16, #tpu.memory_space<vmem>>) attributes {dimension_semantics = [#tpu.dimension_semantics<parallel>], iteration_bounds = array<i64: 2>, scalar_prefetch = 0 : i64, scratch_operands = 0 : i64, tpu.core_type = #tpu.core_type<tc>, window_params = [{transform_indices = @transform_0, window_bounds = array<i64: 1, 8, 96>}, {transform_indices = @transform_1, window_bounds = array<i64: 1, 8, 32>}]} {
    %c0 = arith.constant 0 : index
    %c0_0 = arith.constant 0 : index
    %c0_1 = arith.constant 0 : index
    %0 = vector.load %arg1[%c0, %c0_0, %c0_1] : memref<1x8x96xbf16, #tpu.memory_space<vmem>>, vector<1x8x8xbf16>
    %1 = vector.shape_cast %0 : vector<1x8x8xbf16> to vector<8x8xbf16>
    %c0_2 = arith.constant 0 : index
    %c0_3 = arith.constant 0 : index
    %c32 = arith.constant 32 : index
    %2 = vector.load %arg1[%c0_2, %c0_3, %c32] : memref<1x8x96xbf16, #tpu.memory_space<vmem>>, vector<1x8x8xbf16>
    %3 = vector.shape_cast %2 : vector<1x8x8xbf16> to vector<8x8xbf16>
    %c0_4 = arith.constant 0 : index
    %c0_5 = arith.constant 0 : index
    %c64 = arith.constant 64 : index
    %4 = vector.load %arg1[%c0_4, %c0_5, %c64] : memref<1x8x96xbf16, #tpu.memory_space<vmem>>, vector<1x8x8xbf16>
    %5 = vector.shape_cast %4 : vector<1x8x8xbf16> to vector<8x8xbf16>
    %cst = arith.constant dense<0.000000e+00> : vector<8x8xf32>
    %6 = tpu.matmul %1, %3, %cst {dimension_numbers = #tpu.dot_dimension_numbers<[1], [1], [0], [0], [0, 0, 1, 0], [], []>} : vector<8x8xbf16>, vector<8x8xbf16>, vector<8x8xf32> -> vector<8x8xf32>
    %cst_6 = arith.constant dense<0xFF800000> : vector<8xf32>
    %7 = vector.multi_reduction <maximumf>, %6, %cst_6 [1] : vector<8x8xf32> to vector<8xf32>
    %8 = vector.shape_cast %7 : vector<8xf32> to vector<8x1xf32>
    %9 = vector.broadcast %8 : vector<8x1xf32> to vector<8x8xf32>
    %10 = arith.subf %6, %9 : vector<8x8xf32>
    %11 = math.exp %10 : vector<8x8xf32>
    %cst_7 = arith.constant dense<0.000000e+00> : vector<8xf32>
    %12 = vector.multi_reduction <add>, %11, %cst_7 [1] : vector<8x8xf32> to vector<8xf32>
    %13 = vector.shape_cast %12 : vector<8xf32> to vector<8x1xf32>
    %14 = arith.truncf %11 : vector<8x8xf32> to vector<8x8xbf16>
    %cst_8 = arith.constant dense<0.000000e+00> : vector<8x8xf32>
    %15 = tpu.matmul %14, %5, %cst_8 {dimension_numbers = #tpu.dot_dimension_numbers<[1], [0], [0], [1], [0, 0, 1, 1], [], []>} : vector<8x8xbf16>, vector<8x8xbf16>, vector<8x8xf32> -> vector<8x8xf32>
    %16 = tpu.reciprocal %13 {approx = true} : vector<8x1xf32> -> vector<8x1xf32>
    %17 = vector.broadcast %16 : vector<8x1xf32> to vector<8x8xf32>
    %18 = arith.mulf %15, %17 : vector<8x8xf32>
    %19 = arith.truncf %18 : vector<8x8xf32> to vector<8x8xbf16>
    %c0_9 = arith.constant 0 : index
    %c0_10 = arith.constant 0 : index
    %c0_11 = arith.constant 0 : index
    %20 = vector.load %arg2[%c0_9, %c0_10, %c0_11] : memref<1x8x32xbf16, #tpu.memory_space<vmem>>, vector<1x8x8xbf16>
    %21 = vector.shape_cast %20 : vector<1x8x8xbf16> to vector<8x8xbf16>
    %22 = vector.shape_cast %19 : vector<8x8xbf16> to vector<1x8x8xbf16>
    tpu.vector_store %arg2[%c0_9, %c0_10, %c0_11], %22 {strides = array<i32>} : memref<1x8x32xbf16, #tpu.memory_space<vmem>>, vector<1x8x8xbf16>,
    %c0_12 = arith.constant 0 : index
    %c0_13 = arith.constant 0 : index
    %c8 = arith.constant 8 : index
    %23 = vector.load %arg1[%c0_12, %c0_13, %c8] : memref<1x8x96xbf16, #tpu.memory_space<vmem>>, vector<1x8x8xbf16>
    %24 = vector.shape_cast %23 : vector<1x8x8xbf16> to vector<8x8xbf16>
    %c0_14 = arith.constant 0 : index
    %c0_15 = arith.constant 0 : index
    %c40 = arith.constant 40 : index
    %25 = vector.load %arg1[%c0_14, %c0_15, %c40] : memref<1x8x96xbf16, #tpu.memory_space<vmem>>, vector<1x8x8xbf16>
    %26 = vector.shape_cast %25 : vector<1x8x8xbf16> to vector<8x8xbf16>
    %c0_16 = arith.constant 0 : index
    %c0_17 = arith.constant 0 : index
    %c72 = arith.constant 72 : index
    %27 = vector.load %arg1[%c0_16, %c0_17, %c72] : memref<1x8x96xbf16, #tpu.memory_space<vmem>>, vector<1x8x8xbf16>
    %28 = vector.shape_cast %27 : vector<1x8x8xbf16> to vector<8x8xbf16>
    %cst_18 = arith.constant dense<0.000000e+00> : vector<8x8xf32>
    %29 = tpu.matmul %24, %26, %cst_18 {dimension_numbers = #tpu.dot_dimension_numbers<[1], [1], [0], [0], [0, 0, 1, 0], [], []>} : vector<8x8xbf16>, vector<8x8xbf16>, vector<8x8xf32> -> vector<8x8xf32>
    %cst_19 = arith.constant dense<0xFF800000> : vector<8xf32>
    %30 = vector.multi_reduction <maximumf>, %29, %cst_19 [1] : vector<8x8xf32> to vector<8xf32>
    %31 = vector.shape_cast %30 : vector<8xf32> to vector<8x1xf32>
    %32 = vector.broadcast %31 : vector<8x1xf32> to vector<8x8xf32>
    %33 = arith.subf %29, %32 : vector<8x8xf32>
    %34 = math.exp %33 : vector<8x8xf32>
    %cst_20 = arith.constant dense<0.000000e+00> : vector<8xf32>
    %35 = vector.multi_reduction <add>, %34, %cst_20 [1] : vector<8x8xf32> to vector<8xf32>
    %36 = vector.shape_cast %35 : vector<8xf32> to vector<8x1xf32>
    %37 = arith.truncf %34 : vector<8x8xf32> to vector<8x8xbf16>
    %cst_21 = arith.constant dense<0.000000e+00> : vector<8x8xf32>
    %38 = tpu.matmul %37, %28, %cst_21 {dimension_numbers = #tpu.dot_dimension_numbers<[1], [0], [0], [1], [0, 0, 1, 1], [], []>} : vector<8x8xbf16>, vector<8x8xbf16>, vector<8x8xf32> -> vector<8x8xf32>
    %39 = tpu.reciprocal %36 {approx = true} : vector<8x1xf32> -> vector<8x1xf32>
    %40 = vector.broadcast %39 : vector<8x1xf32> to vector<8x8xf32>
    %41 = arith.mulf %38, %40 : vector<8x8xf32>
    %42 = arith.truncf %41 : vector<8x8xf32> to vector<8x8xbf16>
    %c0_22 = arith.constant 0 : index
    %c0_23 = arith.constant 0 : index
    %c8_24 = arith.constant 8 : index
    %43 = vector.load %arg2[%c0_22, %c0_23, %c8_24] : memref<1x8x32xbf16, #tpu.memory_space<vmem>>, vector<1x8x8xbf16>
    %44 = vector.shape_cast %43 : vector<1x8x8xbf16> to vector<8x8xbf16>
    %45 = vector.shape_cast %42 : vector<8x8xbf16> to vector<1x8x8xbf16>
    tpu.vector_store %arg2[%c0_22, %c0_23, %c8_24], %45 {strides = array<i32>} : memref<1x8x32xbf16, #tpu.memory_space<vmem>>, vector<1x8x8xbf16>,
    %c0_25 = arith.constant 0 : index
    %c0_26 = arith.constant 0 : index
    %c16 = arith.constant 16 : index
    %46 = vector.load %arg1[%c0_25, %c0_26, %c16] : memref<1x8x96xbf16, #tpu.memory_space<vmem>>, vector<1x8x8xbf16>
    %47 = vector.shape_cast %46 : vector<1x8x8xbf16> to vector<8x8xbf16>
    %c0_27 = arith.constant 0 : index
    %c0_28 = arith.constant 0 : index
    %c48 = arith.constant 48 : index
    %48 = vector.load %arg1[%c0_27, %c0_28, %c48] : memref<1x8x96xbf16, #tpu.memory_space<vmem>>, vector<1x8x8xbf16>
    %49 = vector.shape_cast %48 : vector<1x8x8xbf16> to vector<8x8xbf16>
    %c0_29 = arith.constant 0 : index
    %c0_30 = arith.constant 0 : index
    %c80 = arith.constant 80 : index
    %50 = vector.load %arg1[%c0_29, %c0_30, %c80] : memref<1x8x96xbf16, #tpu.memory_space<vmem>>, vector<1x8x8xbf16>
    %51 = vector.shape_cast %50 : vector<1x8x8xbf16> to vector<8x8xbf16>
    %cst_31 = arith.constant dense<0.000000e+00> : vector<8x8xf32>
    %52 = tpu.matmul %47, %49, %cst_31 {dimension_numbers = #tpu.dot_dimension_numbers<[1], [1], [0], [0], [0, 0, 1, 0], [], []>} : vector<8x8xbf16>, vector<8x8xbf16>, vector<8x8xf32> -> vector<8x8xf32>
    %cst_32 = arith.constant dense<0xFF800000> : vector<8xf32>
    %53 = vector.multi_reduction <maximumf>, %52, %cst_32 [1] : vector<8x8xf32> to vector<8xf32>
    %54 = vector.shape_cast %53 : vector<8xf32> to vector<8x1xf32>
    %55 = vector.broadcast %54 : vector<8x1xf32> to vector<8x8xf32>
    %56 = arith.subf %52, %55 : vector<8x8xf32>
    %57 = math.exp %56 : vector<8x8xf32>
    %cst_33 = arith.constant dense<0.000000e+00> : vector<8xf32>
    %58 = vector.multi_reduction <add>, %57, %cst_33 [1] : vector<8x8xf32> to vector<8xf32>
    %59 = vector.shape_cast %58 : vector<8xf32> to vector<8x1xf32>
    %60 = arith.truncf %57 : vector<8x8xf32> to vector<8x8xbf16>
    %cst_34 = arith.constant dense<0.000000e+00> : vector<8x8xf32>
    %61 = tpu.matmul %60, %51, %cst_34 {dimension_numbers = #tpu.dot_dimension_numbers<[1], [0], [0], [1], [0, 0, 1, 1], [], []>} : vector<8x8xbf16>, vector<8x8xbf16>, vector<8x8xf32> -> vector<8x8xf32>
    %62 = tpu.reciprocal %59 {approx = true} : vector<8x1xf32> -> vector<8x1xf32>
    %63 = vector.broadcast %62 : vector<8x1xf32> to vector<8x8xf32>
    %64 = arith.mulf %61, %63 : vector<8x8xf32>
    %65 = arith.truncf %64 : vector<8x8xf32> to vector<8x8xbf16>
    %c0_35 = arith.constant 0 : index
    %c0_36 = arith.constant 0 : index
    %c16_37 = arith.constant 16 : index
    %66 = vector.load %arg2[%c0_35, %c0_36, %c16_37] : memref<1x8x32xbf16, #tpu.memory_space<vmem>>, vector<1x8x8xbf16>
    %67 = vector.shape_cast %66 : vector<1x8x8xbf16> to vector<8x8xbf16>
    %68 = vector.shape_cast %65 : vector<8x8xbf16> to vector<1x8x8xbf16>
    tpu.vector_store %arg2[%c0_35, %c0_36, %c16_37], %68 {strides = array<i32>} : memref<1x8x32xbf16, #tpu.memory_space<vmem>>, vector<1x8x8xbf16>,
    %c0_38 = arith.constant 0 : index
    %c0_39 = arith.constant 0 : index
    %c24 = arith.constant 24 : index
    %69 = vector.load %arg1[%c0_38, %c0_39, %c24] : memref<1x8x96xbf16, #tpu.memory_space<vmem>>, vector<1x8x8xbf16>
    %70 = vector.shape_cast %69 : vector<1x8x8xbf16> to vector<8x8xbf16>
    %c0_40 = arith.constant 0 : index
    %c0_41 = arith.constant 0 : index
    %c56 = arith.constant 56 : index
    %71 = vector.load %arg1[%c0_40, %c0_41, %c56] : memref<1x8x96xbf16, #tpu.memory_space<vmem>>, vector<1x8x8xbf16>
    %72 = vector.shape_cast %71 : vector<1x8x8xbf16> to vector<8x8xbf16>
    %c0_42 = arith.constant 0 : index
    %c0_43 = arith.constant 0 : index
    %c88 = arith.constant 88 : index
    %73 = vector.load %arg1[%c0_42, %c0_43, %c88] : memref<1x8x96xbf16, #tpu.memory_space<vmem>>, vector<1x8x8xbf16>
    %74 = vector.shape_cast %73 : vector<1x8x8xbf16> to vector<8x8xbf16>
    %cst_44 = arith.constant dense<0.000000e+00> : vector<8x8xf32>
    %75 = tpu.matmul %70, %72, %cst_44 {dimension_numbers = #tpu.dot_dimension_numbers<[1], [1], [0], [0], [0, 0, 1, 0], [], []>} : vector<8x8xbf16>, vector<8x8xbf16>, vector<8x8xf32> -> vector<8x8xf32>
    %cst_45 = arith.constant dense<0xFF800000> : vector<8xf32>
    %76 = vector.multi_reduction <maximumf>, %75, %cst_45 [1] : vector<8x8xf32> to vector<8xf32>
    %77 = vector.shape_cast %76 : vector<8xf32> to vector<8x1xf32>
    %78 = vector.broadcast %77 : vector<8x1xf32> to vector<8x8xf32>
    %79 = arith.subf %75, %78 : vector<8x8xf32>
    %80 = math.exp %79 : vector<8x8xf32>
    %cst_46 = arith.constant dense<0.000000e+00> : vector<8xf32>
    %81 = vector.multi_reduction <add>, %80, %cst_46 [1] : vector<8x8xf32> to vector<8xf32>
    %82 = vector.shape_cast %81 : vector<8xf32> to vector<8x1xf32>
    %83 = arith.truncf %80 : vector<8x8xf32> to vector<8x8xbf16>
    %cst_47 = arith.constant dense<0.000000e+00> : vector<8x8xf32>
    %84 = tpu.matmul %83, %74, %cst_47 {dimension_numbers = #tpu.dot_dimension_numbers<[1], [0], [0], [1], [0, 0, 1, 1], [], []>} : vector<8x8xbf16>, vector<8x8xbf16>, vector<8x8xf32> -> vector<8x8xf32>
    %85 = tpu.reciprocal %82 {approx = true} : vector<8x1xf32> -> vector<8x1xf32>
    %86 = vector.broadcast %85 : vector<8x1xf32> to vector<8x8xf32>
    %87 = arith.mulf %84, %86 : vector<8x8xf32>
    %88 = arith.truncf %87 : vector<8x8xf32> to vector<8x8xbf16>
    %c0_48 = arith.constant 0 : index
    %c0_49 = arith.constant 0 : index
    %c24_50 = arith.constant 24 : index
    %89 = vector.load %arg2[%c0_48, %c0_49, %c24_50] : memref<1x8x32xbf16, #tpu.memory_space<vmem>>, vector<1x8x8xbf16>
    %90 = vector.shape_cast %89 : vector<1x8x8xbf16> to vector<8x8xbf16>
    %91 = vector.shape_cast %88 : vector<8x8xbf16> to vector<1x8x8xbf16>
    tpu.vector_store %arg2[%c0_48, %c0_49, %c24_50], %91 {strides = array<i32>} : memref<1x8x32xbf16, #tpu.memory_space<vmem>>, vector<1x8x8xbf16>,
    return
  }
  func.func @transform_0(%arg0: i32) -> (i32, i32, i32) {
    %c0_i32 = arith.constant 0 : i32
    %c0_i32_0 = arith.constant 0 : i32
    %c0_i32_1 = arith.constant 0 : i32
    return %arg0, %c0_i32, %c0_i32_0 : i32, i32, i32
  }
  func.func @transform_1(%arg0: i32) -> (i32, i32, i32) {
    %c0_i32 = arith.constant 0 : i32
    %c0_i32_0 = arith.constant 0 : i32
    %c0_i32_1 = arith.constant 0 : i32
    return %arg0, %c0_i32, %c0_i32_0 : i32, i32, i32
  }
}

module attributes {stable_mosaic.version = 11 : i64} {
  func.func @_matmul_kernel_f32_out(%arg0: i32, %arg1: i32, %arg2: i32, %arg3: memref<16x32xbf16, #tpu.memory_space<vmem>>, %arg4: memref<32x32xbf16, #tpu.memory_space<vmem>>, %arg5: memref<1x32xf32, #tpu.memory_space<vmem>>, %arg6: memref<16x32xf32, #tpu.memory_space<vmem>>) attributes {dimension_semantics = [#tpu.dimension_semantics<parallel>, #tpu.dimension_semantics<parallel>, #tpu.dimension_semantics<arbitrary>], iteration_bounds = array<i64: 1, 1, 1>, scalar_prefetch = 0 : i64, scratch_operands = 0 : i64, tpu.core_type = #tpu.core_type<tc>, window_params = [{transform_indices = @transform_0, window_bounds = array<i64: 16, 32>}, {transform_indices = @transform_1, window_bounds = array<i64: 32, 32>}, {transform_indices = @transform_2, window_bounds = array<i64: 1, 32>}, {transform_indices = @transform_3, window_bounds = array<i64: 16, 32>}]} {
    %c0_i32 = arith.constant 0 : i32
    %0 = arith.cmpi eq, %arg2, %c0_i32 : i32
    %1 = arith.extui %0 : i1 to i32
    %c0_i32_0 = arith.constant 0 : i32
    %2 = arith.cmpi ne, %1, %c0_i32_0 : i32
    scf.if %2 {
      %c0_8 = arith.constant 0 : index
      %c0_9 = arith.constant 0 : index
      %9 = vector.load %arg5[%c0_8, %c0_9] : memref<1x32xf32, #tpu.memory_space<vmem>>, vector<1x32xf32>
      %10 = vector.shape_cast %9 : vector<1x32xf32> to vector<1x32xf32>
      %11 = vector.broadcast %10 : vector<1x32xf32> to vector<16x32xf32>
      %c0_10 = arith.constant 0 : index
      %c0_11 = arith.constant 0 : index
      %12 = vector.load %arg6[%c0_10, %c0_11] : memref<16x32xf32, #tpu.memory_space<vmem>>, vector<16x32xf32>
      tpu.vector_store %arg6[%c0_10, %c0_11], %11 {strides = array<i32>} : memref<16x32xf32, #tpu.memory_space<vmem>>, vector<16x32xf32>,
    } else {
    }
    %c0 = arith.constant 0 : index
    %c0_1 = arith.constant 0 : index
    %3 = vector.load %arg6[%c0, %c0_1] : memref<16x32xf32, #tpu.memory_space<vmem>>, vector<16x32xf32>
    %c0_2 = arith.constant 0 : index
    %c0_3 = arith.constant 0 : index
    %4 = vector.load %arg3[%c0_2, %c0_3] : memref<16x32xbf16, #tpu.memory_space<vmem>>, vector<16x32xbf16>
    %c0_4 = arith.constant 0 : index
    %c0_5 = arith.constant 0 : index
    %5 = vector.load %arg4[%c0_4, %c0_5] : memref<32x32xbf16, #tpu.memory_space<vmem>>, vector<32x32xbf16>
    %cst = arith.constant dense<0.000000e+00> : vector<16x32xf32>
    %6 = tpu.matmul %4, %5, %cst {dimension_numbers = #tpu.dot_dimension_numbers<[1], [0], [0], [1], [0, 0, 1, 1], [], []>} : vector<16x32xbf16>, vector<32x32xbf16>, vector<16x32xf32> -> vector<16x32xf32>
    %7 = arith.addf %3, %6 : vector<16x32xf32>
    %c0_6 = arith.constant 0 : index
    %c0_7 = arith.constant 0 : index
    %8 = vector.load %arg6[%c0_6, %c0_7] : memref<16x32xf32, #tpu.memory_space<vmem>>, vector<16x32xf32>
    tpu.vector_store %arg6[%c0_6, %c0_7], %7 {strides = array<i32>} : memref<16x32xf32, #tpu.memory_space<vmem>>, vector<16x32xf32>,
    return
  }
  func.func @transform_0(%arg0: i32, %arg1: i32, %arg2: i32) -> (i32, i32) {
    %c0_i32 = arith.constant 0 : i32
    return %arg0, %arg2 : i32, i32
  }
  func.func @transform_1(%arg0: i32, %arg1: i32, %arg2: i32) -> (i32, i32) {
    %c0_i32 = arith.constant 0 : i32
    return %arg2, %arg1 : i32, i32
  }
  func.func @transform_2(%arg0: i32, %arg1: i32, %arg2: i32) -> (i32, i32) {
    %c0_i32 = arith.constant 0 : i32
    %c0_i32_0 = arith.constant 0 : i32
    return %c0_i32, %arg1 : i32, i32
  }
  func.func @transform_3(%arg0: i32, %arg1: i32, %arg2: i32) -> (i32, i32) {
    %c0_i32 = arith.constant 0 : i32
    return %arg0, %arg1 : i32, i32
  }
}

</mosaic_0001>

<llo_original>
// kernel: attention_fwd.3
$region0: #{attention_fwd.3}
  #allocation0 [shape = 'u32[]', space=smem, size = 0x4, offset = 0x4, fixed_abs, tag = 'smem constant byte address 0x4 - core index']
  #allocation1 [shape = 'u32[72,128]{1,0:T(1,128)}', space=vmem, size = 0x9000, scoped, tag = 'internal scratch']
  #allocation2 [shape = 'f32[16,96]{1,0:T(8,128)}', space=vmem, size = 0x2000, scoped, tag = 'scratch operand']
  %s0 = inlined_call_operand.vmem [shape: bf16[16,32], index: 0, kind: input, shape index: {}]
  %s1 = inlined_call_operand.vmem [shape: bf16[32,96], index: 1, kind: input, shape index: {}]
  %s2 = inlined_call_operand.vmem [shape: f32[1,96], index: 2, kind: input, shape index: {}]
  %s3 = inlined_call_operand.vmem [shape: bf16[16,96], index: 3, kind: output, shape index: {}]
  %s4 = sld [smem:[#allocation0]]
  $region30: #{attention_fwd.3} parent=0
    _
  %s6 = ssub.s32 1, %s4
  %s7 = scalar_select 0, %s6, %s4
  // Predicated region
  $region2: #{attention_fwd.3} parent=0 // pred_check
    _
  $region3: #{attention_fwd.3} parent=0 // pred_check_branch
    %9 = sbr.rel (0) target = $region5
  $region4: #{attention_fwd.3} parent=0 // pred_region
    _
  $region5: #{attention_fwd.3} parent=0 // pred_fallthru
    _
  // Predicated region
  $region6: #{attention_fwd.3} parent=0 // pred_check
    _
  $region7: #{attention_fwd.3} parent=0 // pred_check_branch
    %11 = sbr.rel (0) target = $region9
  $region8: #{attention_fwd.3} parent=0 // pred_region
    _
  $region9: #{attention_fwd.3} parent=0 // pred_fallthru
    _
  // Predicated region
  $region10: #{attention_fwd.3} parent=0 // pred_check
    _
  $region11: #{attention_fwd.3} parent=0 // pred_check_branch
    %13 = sbr.rel (0) target = $region13
  $region12: #{attention_fwd.3} parent=0 // pred_region
    _
  $region13: #{attention_fwd.3} parent=0 // pred_fallthru
    _
  %p15 = scmp.eq.s32.totalorder 0, 0
  // Predicated region
  $region14: #{attention_fwd.3} parent=0 // pred_check
    %p16 = pneg %p15
  $region15: #{attention_fwd.3} parent=0 // pred_check_branch
    %18 = sbr.rel (%p16) target = $region17
  $region16: #{attention_fwd.3} parent=0 // pred_region
    %vm19 = vcmask 785408
    %20 = vst.msk [vmem:[#allocation2] sm:$0xff] %vm19, 0.0
    %21 = vst.msk [vmem:[#allocation2 + $0x8] sm:$0xff] %vm19, 0.0
  $region17: #{attention_fwd.3} parent=0 // pred_fallthru
    _
  %v22 = vld [vmem:[#allocation2] sm:$0xff]
  %v23 = vld [vmem:[#allocation2 + $0x8] sm:$0xff]
  %v24 = vld [vmem:[%s0] sm:$0xf]
  %v25 = vld [vmem:[%s0 + $0x4] sm:$0xf]
  %v26 = vld [vmem:[%s1] sm:$0xf]
  %v27 = vld [vmem:[%s1 + $0x4] sm:$0xf]
  %v28 = vld [vmem:[%s1 + $0x8] sm:$0xf]
  %v29 = vld [vmem:[%s1 + $0xc] sm:$0xf]
  %v32 = vunpack.c.l.b16 %v24
  %v33 = vunpack.c.l.b16 %v25
  %v34 = vpack.c.b16 %v33, %v32
  %v39 = vunpack.c.l.b16 %v26
  %v40 = vunpack.c.l.b16 %v27
  %v41 = vunpack.c.l.b16 %v28
  %v42 = vunpack.c.l.b16 %v29
  %v43 = vpack.c.b16 %v40, %v39
  %v44 = vpack.c.b16 %v42, %v41
  %vm47 = vcmask 261120
  %v49 = vsel %vm47, %v34, 0
  %51 = vmatpush.bf16.msra.mxu0 0
  %52 = vmatpush.bf16.msra.mxu0 0
  %53 = vmatpush.bf16.msra.mxu0 0
  %54 = vmatpush.bf16.msra.mxu0 0
  %55 = vmatpush.bf16.msra.mxu0 0
  %56 = vmatpush.bf16.msra.mxu0 0
  %57 = vmatpush.bf16.msra.mxu0 %v44
  %58 = vmatpush.bf16.msra.mxu0 %v43
  %59 = vmatmul.bf16.gmra.mxu0 %v49
  %v60 = vpop.f32.mrf.mxu0
  %v61 = vadd.f32 0.0, %v60
  %v62 = vpop.f32.mrf.mxu0
  %v63 = vadd.f32 0.0, %v62
  %64 = vdwg.mxu0
  %v65 = vadd.f32 %v22, %v61
  %v66 = vadd.f32 %v23, %v63
  %vm67 = vcmask 785408
  %68 = vst.msk [vmem:[#allocation2] sm:$0xff] %vm67, %v65
  %69 = vst.msk [vmem:[#allocation2 + $0x8] sm:$0xff] %vm67, %v66
  // Predicated region
  $region18: #{attention_fwd.3} parent=0 // pred_check
    %p70 = pneg %p15
  $region19: #{attention_fwd.3} parent=0 // pred_check_branch
    %72 = sbr.rel (%p70) target = $region21
  $region20: #{attention_fwd.3} parent=0 // pred_region
    %v73 = vld [vmem:[#allocation2] sm:$0xff]
    %v74 = vld [vmem:[#allocation2 + $0x8] sm:$0xff]
    %v75 = vld [vmem:[%s2] sm:$0x1]
    %v77 = vperm.slane %v75, 0
    %v79 = vadd.f32 %v73, %v77
    %v80 = vadd.f32 %v74, %v77
    %v81 = vpack.c.bf16 %v79, %v79
    %v82 = vpack.c.bf16 %v80, %v80
    %vm83 = vcmask 781312
    %84 = vst.msk [vmem:[%s3] sm:$0xf] %vm83, %v81
    %85 = vst.msk [vmem:[%s3 + $0x4] sm:$0xf] %vm83, %v82
  $region21: #{attention_fwd.3} parent=0 // pred_fallthru
    _
  // Predicated region
  $region22: #{attention_fwd.3} parent=0 // pred_check
    _
  $region23: #{attention_fwd.3} parent=0 // pred_check_branch
    %87 = sbr.rel (0) target = $region25
  $region24: #{attention_fwd.3} parent=0 // pred_region
    _
  $region25: #{attention_fwd.3} parent=0 // pred_fallthru
    _
  // Predicated region
  $region26: #{attention_fwd.3} parent=0 // pred_check
    _
  $region27: #{attention_fwd.3} parent=0 // pred_check_branch
    %89 = sbr.rel (0) target = $region29
  $region28: #{attention_fwd.3} parent=0 // pred_region
    _
  $region29: #{attention_fwd.3} parent=0 // pred_fallthru
    _

// kernel: attention_fwd.5
$region0: #{attention_fwd.5}
  #allocation0 [shape = 'u32[]', space=smem, size = 0x4, offset = 0x4, fixed_abs, tag = 'smem constant byte address 0x4 - core index']
  #allocation1 [shape = 'u32[72,128]{1,0:T(1,128)}', space=vmem, size = 0x9000, scoped, tag = 'internal scratch']
  %s0 = inlined_call_operand.vmem [shape: bf16[16,32], index: 0, kind: input, shape index: {}]
  %s1 = inlined_call_operand.vmem [shape: bf16[32,32], index: 1, kind: input, shape index: {}]
  %s2 = inlined_call_operand.hbm [shape: f32[1,32], index: 2, kind: input, shape index: {}]
  %s3 = inlined_call_operand.hbm [shape: f32[16,32], index: 3, kind: output, shape index: {}]
  %s4 = sld [smem:[#allocation0]]
  $region30: #{attention_fwd.5} parent=0
    _
  %s6 = ssub.s32 1, %s4
  %s7 = scalar_select 0, %s6, %s4
  $region1: #{attention_fwd.5} parent=0
    #allocation2 [shape = 'u8[512]{0}', space=vmem, size = 0x400, scoped, tag = 'input window, operand 2, single buffered']
    #allocation3 [shape = 's32[1]{0}', space=sflag, size = 0x4, scoped, tag = 'scoped memory for attention_fwd.5']
    #allocation4 [shape = 's32[1]{0}', space=sflag, size = 0x4, scoped, tag = 'scoped memory for attention_fwd.5']
    #allocation5 [shape = 'u8[8192]{0}', space=vmem, size = 0x2000, scoped, tag = 'output window, operand 0, single buffered']
    %8 = vsyncpa [#allocation3], 0
    %9 = vsyncpa [#allocation4], 0
    // Predicated region
    $region2: #{attention_fwd.5} parent=1 // pred_check
      _
    $region3: #{attention_fwd.5} parent=1 // pred_check_branch
      %11 = sbr.rel (0) target = $region5
    $region4: #{attention_fwd.5} parent=1 // pred_region
      _
    $region5: #{attention_fwd.5} parent=1 // pred_fallthru
      _
    // Predicated region
    $region6: #{attention_fwd.5} parent=1 // pred_check
      _
    $region7: #{attention_fwd.5} parent=1 // pred_check_branch
      %13 = sbr.rel (0) target = $region9
    $region8: #{attention_fwd.5} parent=1 // pred_region
      _
    $region9: #{attention_fwd.5} parent=1 // pred_fallthru
      _
    // Predicated region
    $region10: #{attention_fwd.5} parent=1 // pred_check
      _
    $region11: #{attention_fwd.5} parent=1 // pred_check_branch
      %15 = sbr.rel (0) target = $region13
    $region12: #{attention_fwd.5} parent=1 // pred_region
      %17 = vsyncadd [#allocation3], 0
      %s19 = sshll.u32 %s2, 4
      %s20 = int_to_ptr.hbm [resolvable:$true] %s19
      %s21 = sshll.u32 [#allocation2], 4
      %s22 = int_to_ptr.vmem [resolvable:$true] %s21
      %24 = dma.hbm_to_vmem [thread:$0]  %s20, 16, %s22, [#allocation3]
    $region13: #{attention_fwd.5} parent=1 // pred_fallthru
      _
    // Predicated region
    $region14: #{attention_fwd.5} parent=1 // pred_check
      _
    $region15: #{attention_fwd.5} parent=1 // pred_check_branch
      %26 = sbr.rel (0) target = $region17
    $region16: #{attention_fwd.5} parent=1 // pred_region
      %28 = dma.done [#allocation3], 16
    $region17: #{attention_fwd.5} parent=1 // pred_fallthru
      _
    %p30 = scmp.eq.s32.totalorder 0, 0
    // Predicated region
    $region18: #{attention_fwd.5} parent=1 // pred_check
      %p31 = pneg %p30
    $region19: #{attention_fwd.5} parent=1 // pred_check_branch
      %33 = sbr.rel (%p31) target = $region21
    $region20: #{attention_fwd.5} parent=1 // pred_region
      %v34 = vld [vmem:[#allocation2] sm:$0x1]
      %v36 = vperm.slane %v34, 0
      %vm38 = vcmask 261120
      %39 = vst.msk [vmem:[#allocation5] sm:$0xff] %vm38, %v36
      %40 = vst.msk [vmem:[#allocation5 + $0x8] sm:$0xff] %vm38, %v36
    $region21: #{attention_fwd.5} parent=1 // pred_fallthru
      _
    %v41 = vld [vmem:[#allocation5] sm:$0xff]
    %v42 = vld [vmem:[#allocation5 + $0x8] sm:$0xff]
    %v43 = vld [vmem:[%s0] sm:$0xf]
    %v44 = vld [vmem:[%s0 + $0x4] sm:$0xf]
    %v45 = vld [vmem:[%s1] sm:$0xf]
    %v46 = vld [vmem:[%s1 + $0x4] sm:$0xf]
    %v47 = vld [vmem:[%s1 + $0x8] sm:$0xf]
    %v48 = vld [vmem:[%s1 + $0xc] sm:$0xf]
    %v51 = vunpack.c.l.b16 %v43
    %v52 = vunpack.c.l.b16 %v44
    %v53 = vpack.c.b16 %v52, %v51
    %v58 = vunpack.c.l.b16 %v45
    %v59 = vunpack.c.l.b16 %v46
    %v60 = vunpack.c.l.b16 %v47
    %v61 = vunpack.c.l.b16 %v48
    %v62 = vpack.c.b16 %v59, %v58
    %v63 = vpack.c.b16 %v61, %v60
    %vm66 = vcmask 261120
    %v68 = vsel %vm66, %v53, 0
    %70 = vmatpush.bf16.msra.mxu0 0
    %71 = vmatpush.bf16.msra.mxu0 0
    %72 = vmatpush.bf16.msra.mxu0 0
    %73 = vmatpush.bf16.msra.mxu0 0
    %74 = vmatpush.bf16.msra.mxu0 0
    %75 = vmatpush.bf16.msra.mxu0 0
    %76 = vmatpush.bf16.msra.mxu0 %v63
    %77 = vmatpush.bf16.msra.mxu0 %v62
    %78 = vmatmul.bf16.gmra.mxu0 %v68
    %v79 = vpop.f32.mrf.mxu0
    %v80 = vadd.f32 0.0, %v79
    %v81 = vpop.f32.mrf.mxu0
    %v82 = vadd.f32 0.0, %v81
    %83 = vdwg.mxu0
    %v84 = vadd.f32 %v41, %v80
    %v85 = vadd.f32 %v42, %v82
    %86 = vst.msk [vmem:[#allocation5] sm:$0xff] %vm66, %v84
    %87 = vst.msk [vmem:[#allocation5 + $0x8] sm:$0xff] %vm66, %v85
    // Predicated region
    $region22: #{attention_fwd.5} parent=1 // pred_check
      _
    $region23: #{attention_fwd.5} parent=1 // pred_check_branch
      %89 = sbr.rel (0) target = $region25
    $region24: #{attention_fwd.5} parent=1 // pred_region
      %91 = vsyncadd [#allocation4], 0
      %s92 = sshll.u32 [#allocation5], 4
      %s93 = int_to_ptr.vmem [resolvable:$true] %s92
      %s94 = sshll.u32 %s3, 4
      %s95 = int_to_ptr.hbm [resolvable:$true] %s94
      %100 = dma.vmem_to_hbm [thread:$0]  %s93, 256, %s95, [#allocation4], 128, 128, 8
    $region25: #{attention_fwd.5} parent=1 // pred_fallthru
      _
    // Predicated region
    $region26: #{attention_fwd.5} parent=1 // pred_check
      _
    $region27: #{attention_fwd.5} parent=1 // pred_check_branch
      %102 = sbr.rel (0) target = $region29
    $region28: #{attention_fwd.5} parent=1 // pred_region
      %104 = dma.done [#allocation4], 256
    $region29: #{attention_fwd.5} parent=1 // pred_fallthru
      _
    %105 = vsyncpa [#allocation3], 1
    %106 = vsyncpa [#allocation4], 1

// kernel: attention_fwd.4
$region0: #{attention_fwd.4}
  #allocation0 [shape = 'u32[]', space=smem, size = 0x4, offset = 0x4, fixed_abs, tag = 'smem constant byte address 0x4 - core index']
  #allocation1 [shape = 'u32[72,128]{1,0:T(1,128)}', space=vmem, size = 0x9000, scoped, tag = 'internal scratch']
  %s0 = inlined_call_operand.vmem [shape: bf16[2,8,96], index: 0, kind: input, shape index: {}]
  %s1 = inlined_call_operand.vmem [shape: bf16[2,8,32], index: 1, kind: output, shape index: {}]
  %s2 = sld [smem:[#allocation0]]
  $region37: #{attention_fwd.4} parent=0
    _
  %s4 = ssub.s32 1, %s2
  %s5 = scalar_select 0, %s4, %s2
  loop: start=0, step=1, limit=4
  $region2: #{attention_fwd.4} parent=0 // loop_pre_header
    _
  $region3: #{attention_fwd.4} parent=0 // loop_header
    %s7 = sphi 0, %s11
    %p8 = scmp.ge.s32.totalorder %s7, 4
    %s17 = sphi 0, %s19
    %s20 = sphi 0, %s17
    %s21 = sphi 0, %s20
    %s37 = sphi 0, %s21
    %s43 = sphi 0, %s45
    %s46 = sphi 0, %s43
    %s47 = sphi 0, %s46
    %s63 = sphi 0, %s47
  $region4: #{attention_fwd.4} parent=0 // loop_header_branch
    %10 = sbr.rel (%p8) target = $region8
  $region5: #{attention_fwd.4} parent=0 // loop_body
    %s12 = ssub.s32 %s7, 1
    %s13 = ssub.s32 %s7, 2
    %s14 = sadd.s32 %s7, 1
    %s15 = ssub.s32 %s7, %s14
    %p16 = scmp.eq.s32.totalorder %s15, 0
    %s18 = sadd.s32 %s17, 1
    %s19 = scalar_select %p16, %s17, %s18
    %p22 = pneg %p16
    %p23 = scmp.eq.s32.totalorder %s7, 1
    %p24 = por %p22, %p23
    %p25 = scmp.ne.s32.totalorder %s17, %s20
    %p26 = scmp.eq.s32.totalorder %s7, 0
    %p27 = por %p25, %p26
    %p28 = scmp.ne.s32.totalorder %s17, %s20
    %p29 = scmp.eq.s32.totalorder %s12, 1
    %p30 = por %p28, %p29
    %p31 = scmp.ne.s32.totalorder %s20, %s21
    %p32 = scmp.eq.s32.totalorder %s12, 0
    %p33 = por %p31, %p32
    %p34 = scmp.ne.s32.totalorder %s20, %s21
    %p35 = scmp.eq.s32.totalorder %s13, 1
    %p36 = por %p34, %p35
    %p38 = scmp.ne.s32.totalorder %s21, %s37
    %p39 = scmp.eq.s32.totalorder %s13, 0
    %p40 = por %p38, %p39
    %s41 = ssub.s32 %s7, %s14
    %p42 = scmp.eq.s32.totalorder %s41, 0
    %s44 = sadd.s32 %s43, 1
    %s45 = scalar_select %p42, %s43, %s44
    %p48 = pneg %p42
    %p49 = scmp.eq.s32.totalorder %s7, 1
    %p50 = por %p48, %p49
    %p51 = scmp.ne.s32.totalorder %s43, %s46
    %p52 = scmp.eq.s32.totalorder %s7, 0
    %p53 = por %p51, %p52
    %p54 = scmp.ne.s32.totalorder %s43, %s46
    %p55 = scmp.eq.s32.totalorder %s12, 1
    %p56 = por %p54, %p55
    %p57 = scmp.ne.s32.totalorder %s46, %s47
    %p58 = scmp.eq.s32.totalorder %s12, 0
    %p59 = por %p57, %p58
    %p60 = scmp.ne.s32.totalorder %s46, %s47
    %p61 = scmp.eq.s32.totalorder %s13, 1
    %p62 = por %p60, %p61
    %p64 = scmp.ne.s32.totalorder %s47, %s63
    %p65 = scmp.eq.s32.totalorder %s13, 0
    %p66 = por %p64, %p65
    %p67 = scmp.le.s32.totalorder 1, %s7
    %p68 = scmp.lt.s32.totalorder %s7, 3
    %p69 = pnand %p67, %p68
    %p70 = pneg %p69
    // Predicated region
    $region9: #{attention_fwd.4} parent=5 // pred_check
      _
    $region10: #{attention_fwd.4} parent=5 // pred_check_branch
      %72 = sbr.rel (%p69) target = $region12
    $region11: #{attention_fwd.4} parent=5 // pred_region
      %s73 = ssub.s32 %s7, 1
    $region12: #{attention_fwd.4} parent=5 // pred_fallthru
      _
    %p74 = scmp.lt.s32.totalorder %s7, 2
    // Predicated region
    $region13: #{attention_fwd.4} parent=5 // pred_check
      %p75 = pneg %p74
    $region14: #{attention_fwd.4} parent=5 // pred_check_branch
      %77 = sbr.rel (%p75) target = $region16
    $region15: #{attention_fwd.4} parent=5 // pred_region
      // Predicated region
      $region17: #{attention_fwd.4} parent=15 // pred_check
        %p78 = pneg %p27
      $region18: #{attention_fwd.4} parent=15 // pred_check_branch
        %80 = sbr.rel (%p78) target = $region20
      $region19: #{attention_fwd.4} parent=15 // pred_region
        %p81 = scmp.lt.s32.totalorder %s7, 1
        %s82 = scalar_select %p81, %s7, 1
        %s83 = smul.addr %s82, 4
        %s84 = scalar_lea.vmem %s0, %s83
      $region20: #{attention_fwd.4} parent=15 // pred_fallthru
        _
    $region16: #{attention_fwd.4} parent=5 // pred_fallthru
      _
    %p85 = scmp.le.s32.totalorder 1, %s7
    %p86 = scmp.lt.s32.totalorder %s7, 3
    %p87 = pnand %p85, %p86
    %p88 = pneg %p87
    // Predicated region
    $region21: #{attention_fwd.4} parent=5 // pred_check
      _
    $region22: #{attention_fwd.4} parent=5 // pred_check_branch
      %90 = sbr.rel (%p87) target = $region24
    $region23: #{attention_fwd.4} parent=5 // pred_region
      %s91 = ssub.s32 %s7, 1
      %p92 = scmp.lt.s32.totalorder %s12, 1
      %s93 = scalar_select %p92, %s12, 1
      %s94 = smul.addr %s93, 4
      %s95 = scalar_lea.vmem %s0, %s94
      %p96 = pneg %p33
      %p97 = pneg %p30
      %p98 = pneg %p59
      %p99 = pneg %p56
      %p100 = scmp.lt.s32.totalorder %s12, 1
      %s101 = scalar_select %p100, %s12, 1
      %s102 = smul.addr %s101, 4
      %s103 = scalar_lea.vmem %s1, %s102
      %p104 = scmp.lt.s32.totalorder %s12, 1
      %s105 = scalar_select %p104, %s12, 1
      %s106 = smul.addr %s105, 4
      %s107 = scalar_lea.vmem %s0, %s106
      %p108 = scmp.lt.s32.totalorder %s12, 1
      %s109 = scalar_select %p108, %s12, 1
      %s110 = smul.addr %s109, 4
      %s111 = scalar_lea.vmem %s1, %s110
      %v113 = vld [vmem:[%s107] sm:$0xf]
      %v115 = vunpack.c.l.b16 %v113
      %v116 = vpack.c.b16 %v115, %v115
      %117 = vrot.lane.b32.xlu0 %v116, 96
      %v118 = vpop.permute.xlu0 %117
      %vm119 = vcmask 64512
      %v121 = vsel %vm119, %v113, 0
      %v124 = vsel %vm119, %v118, 0
      %126 = vmatpush.bf16.xpose.msra.mxu0 0
      %127 = vmatpush.bf16.xpose.msra.mxu0 0
      %128 = vmatpush.bf16.xpose.msra.mxu0 0
      %129 = vmatpush.bf16.xpose.msra.mxu0 0
      %130 = vmatpush.bf16.xpose.msra.mxu0 0
      %131 = vmatpush.bf16.xpose.msra.mxu0 0
      %132 = vmatpush.bf16.xpose.msra.mxu0 0
      %133 = vmatpush.bf16.xpose.msra.mxu0 %v124
      %134 = vmatmul.bf16.gmra.mxu0 %v121
      %v135 = vpop.f32.mrf.mxu0
      %v136 = vadd.f32 0.0, %v135
      %v137 = vpop.f32.mrf.mxu0
      %138 = vdwg.mxu0
      %v139 = vsel %vm119, %v136, -inf
      %140 = vmax.xlane.f32.xlu0 %v139
      %v141 = vpop.xlane.xlu0 %140
      %v142 = vsub.f32 %v136, %v141
      %v143 = vmul.f32 %v142, 1.442695
      %v144 = vpow.pop %v143
      %v145 = vsel %vm119, %v144, 0.0
      %146 = vadd.xlane.f32.xlu0 %v145
      %v147 = vpop.xlane.xlu0 %146
      %v148 = vpack.c.bf16 %v144, %v144
      %149 = vrot.lane.b32.xlu0 %v116, 64
      %v150 = vpop.permute.xlu0 %149
      %v152 = vsel %vm119, %v148, 0
      %vm154 = vcmask 1043456
      %v156 = vsel %vm154, %v150, 0
      %158 = vmatpush.bf16.msra.mxu0 0
      %159 = vmatpush.bf16.msra.mxu0 0
      %160 = vmatpush.bf16.msra.mxu0 0
      %161 = vmatpush.bf16.msra.mxu0 0
      %162 = vmatpush.bf16.msra.mxu0 0
      %163 = vmatpush.bf16.msra.mxu0 0
      %164 = vmatpush.bf16.msra.mxu0 0
      %165 = vmatpush.bf16.msra.mxu0 %v156
      %166 = vmatmul.bf16.gmra.mxu0 %v152
      %v167 = vpop.f32.mrf.mxu0
      %v168 = vadd.f32 0.0, %v167
      %v169 = vpop.f32.mrf.mxu0
      %170 = vdwg.mxu0
      %v171 = vrcp.pop %v147
      %v172 = vmul.f32 %v168, %v171
      %v173 = vpack.c.bf16 %v172, %v172
      %vm174 = vcmask 60416
      %175 = vst.msk [vmem:[%s111] sm:$0xf] %vm174, %v173
      %v176 = vld [vmem:[%s107] sm:$0xf]
      %v178 = vunpack.c.l.b16 %v176
      %v179 = vpack.c.b16 %v178, %v178
      %180 = vrot.lane.b32.xlu0 %v179, 120
      %v181 = vpop.permute.xlu0 %180
      %182 = vrot.lane.b32.xlu0 %v179, 88
      %v183 = vpop.permute.xlu0 %182
      %v185 = vsel %vm119, %v181, 0
      %v188 = vsel %vm119, %v183, 0
      %190 = vmatpush.bf16.xpose.msra.mxu0 0
      %191 = vmatpush.bf16.xpose.msra.mxu0 0
      %192 = vmatpush.bf16.xpose.msra.mxu0 0
      %193 = vmatpush.bf16.xpose.msra.mxu0 0
      %194 = vmatpush.bf16.xpose.msra.mxu0 0
      %195 = vmatpush.bf16.xpose.msra.mxu0 0
      %196 = vmatpush.bf16.xpose.msra.mxu0 0
      %197 = vmatpush.bf16.xpose.msra.mxu0 %v188
      %198 = vmatmul.bf16.gmra.mxu0 %v185
      %v199 = vpop.f32.mrf.mxu0
      %v200 = vadd.f32 0.0, %v199
      %v201 = vpop.f32.mrf.mxu0
      %202 = vdwg.mxu0
      %v203 = vsel %vm119, %v200, -inf
      %204 = vmax.xlane.f32.xlu0 %v203
      %v205 = vpop.xlane.xlu0 %204
      %v206 = vsub.f32 %v200, %v205
      %v207 = vmul.f32 %v206, 1.442695
      %v208 = vpow.pop %v207
      %v209 = vsel %vm119, %v208, 0.0
      %210 = vadd.xlane.f32.xlu0 %v209
      %v211 = vpop.xlane.xlu0 %210
      %v212 = vpack.c.bf16 %v208, %v208
      %213 = vrot.lane.b32.xlu0 %v179, 56
      %v214 = vpop.permute.xlu0 %213
      %v216 = vsel %vm119, %v212, 0
      %v219 = vsel %vm154, %v214, 0
      %221 = vmatpush.bf16.msra.mxu0 0
      %222 = vmatpush.bf16.msra.mxu0 0
      %223 = vmatpush.bf16.msra.mxu0 0
      %224 = vmatpush.bf16.msra.mxu0 0
      %225 = vmatpush.bf16.msra.mxu0 0
      %226 = vmatpush.bf16.msra.mxu0 0
      %227 = vmatpush.bf16.msra.mxu0 0
      %228 = vmatpush.bf16.msra.mxu0 %v219
      %229 = vmatmul.bf16.gmra.mxu0 %v216
      %v230 = vpop.f32.mrf.mxu0
      %v231 = vadd.f32 0.0, %v230
      %v232 = vpop.f32.mrf.mxu0
      %233 = vdwg.mxu0
      %v234 = vrcp.pop %v211
      %v235 = vmul.f32 %v231, %v234
      %v236 = vpack.c.bf16 %v235, %v235
      %238 = vrot.lane.b32.xlu0 %v236, 8
      %v239 = vpop.permute.xlu0 %238
      %vm241 = vcmask 126016
      %242 = vst.msk [vmem:[%s111] sm:$0xf] %vm241, %v239
      %v243 = vld [vmem:[%s107] sm:$0xf]
      %v245 = vunpack.c.l.b16 %v243
      %v246 = vpack.c.b16 %v245, %v245
      %247 = vrot.lane.b32.xlu0 %v246, 112
      %v248 = vpop.permute.xlu0 %247
      %249 = vrot.lane.b32.xlu0 %v246, 80
      %v250 = vpop.permute.xlu0 %249
      %v252 = vsel %vm119, %v248, 0
      %v255 = vsel %vm119, %v250, 0
      %257 = vmatpush.bf16.xpose.msra.mxu0 0
      %258 = vmatpush.bf16.xpose.msra.mxu0 0
      %259 = vmatpush.bf16.xpose.msra.mxu0 0
      %260 = vmatpush.bf16.xpose.msra.mxu0 0
      %261 = vmatpush.bf16.xpose.msra.mxu0 0
      %262 = vmatpush.bf16.xpose.msra.mxu0 0
      %263 = vmatpush.bf16.xpose.msra.mxu0 0
      %264 = vmatpush.bf16.xpose.msra.mxu0 %v255
      %265 = vmatmul.bf16.gmra.mxu0 %v252
      %v266 = vpop.f32.mrf.mxu0
      %v267 = vadd.f32 0.0, %v266
      %v268 = vpop.f32.mrf.mxu0
      %269 = vdwg.mxu0
      %v270 = vsel %vm119, %v267, -inf
      %271 = vmax.xlane.f32.xlu0 %v270
      %v272 = vpop.xlane.xlu0 %271
      %v273 = vsub.f32 %v267, %v272
      %v274 = vmul.f32 %v273, 1.442695
      %v275 = vpow.pop %v274
      %v276 = vsel %vm119, %v275, 0.0
      %277 = vadd.xlane.f32.xlu0 %v276
      %v278 = vpop.xlane.xlu0 %277
      %v279 = vpack.c.bf16 %v275, %v275
      %280 = vrot.lane.b32.xlu0 %v246, 48
      %v281 = vpop.permute.xlu0 %280
      %v283 = vsel %vm119, %v279, 0
      %v286 = vsel %vm154, %v281, 0
      %288 = vmatpush.bf16.msra.mxu0 0
      %289 = vmatpush.bf16.msra.mxu0 0
      %290 = vmatpush.bf16.msra.mxu0 0
      %291 = vmatpush.bf16.msra.mxu0 0
      %292 = vmatpush.bf16.msra.mxu0 0
      %293 = vmatpush.bf16.msra.mxu0 0
      %294 = vmatpush.bf16.msra.mxu0 0
      %295 = vmatpush.bf16.msra.mxu0 %v286
      %296 = vmatmul.bf16.gmra.mxu0 %v283
      %v297 = vpop.f32.mrf.mxu0
      %v298 = vadd.f32 0.0, %v297
      %v299 = vpop.f32.mrf.mxu0
      %300 = vdwg.mxu0
      %v301 = vrcp.pop %v278
      %v302 = vmul.f32 %v298, %v301
      %v303 = vpack.c.bf16 %v302, %v302
      %305 = vrot.lane.b32.xlu0 %v303, 16
      %v306 = vpop.permute.xlu0 %305
      %vm308 = vcmask 191616
      %309 = vst.msk [vmem:[%s111] sm:$0xf] %vm308, %v306
      %v310 = vld [vmem:[%s107] sm:$0xf]
      %v312 = vunpack.c.l.b16 %v310
      %v313 = vpack.c.b16 %v312, %v312
      %314 = vrot.lane.b32.xlu0 %v313, 104
      %v315 = vpop.permute.xlu0 %314
      %316 = vrot.lane.b32.xlu0 %v313, 72
      %v317 = vpop.permute.xlu0 %316
      %v319 = vsel %vm119, %v315, 0
      %v322 = vsel %vm119, %v317, 0
      %324 = vmatpush.bf16.xpose.msra.mxu0 0
      %325 = vmatpush.bf16.xpose.msra.mxu0 0
      %326 = vmatpush.bf16.xpose.msra.mxu0 0
      %327 = vmatpush.bf16.xpose.msra.mxu0 0
      %328 = vmatpush.bf16.xpose.msra.mxu0 0
      %329 = vmatpush.bf16.xpose.msra.mxu0 0
      %330 = vmatpush.bf16.xpose.msra.mxu0 0
      %331 = vmatpush.bf16.xpose.msra.mxu0 %v322
      %332 = vmatmul.bf16.gmra.mxu0 %v319
      %v333 = vpop.f32.mrf.mxu0
      %v334 = vadd.f32 0.0, %v333
      %v335 = vpop.f32.mrf.mxu0
      %336 = vdwg.mxu0
      %v337 = vsel %vm119, %v334, -inf
      %338 = vmax.xlane.f32.xlu0 %v337
      %v339 = vpop.xlane.xlu0 %338
      %v340 = vsub.f32 %v334, %v339
      %v341 = vmul.f32 %v340, 1.442695
      %v342 = vpow.pop %v341
      %v343 = vsel %vm119, %v342, 0.0
      %344 = vadd.xlane.f32.xlu0 %v343
      %v345 = vpop.xlane.xlu0 %344
      %v346 = vpack.c.bf16 %v342, %v342
      %347 = vrot.lane.b32.xlu0 %v313, 40
      %v348 = vpop.permute.xlu0 %347
      %v350 = vsel %vm119, %v346, 0
      %v353 = vsel %vm154, %v348, 0
      %355 = vmatpush.bf16.msra.mxu0 0
      %356 = vmatpush.bf16.msra.mxu0 0
      %357 = vmatpush.bf16.msra.mxu0 0
      %358 = vmatpush.bf16.msra.mxu0 0
      %359 = vmatpush.bf16.msra.mxu0 0
      %360 = vmatpush.bf16.msra.mxu0 0
      %361 = vmatpush.bf16.msra.mxu0 0
      %362 = vmatpush.bf16.msra.mxu0 %v353
      %363 = vmatmul.bf16.gmra.mxu0 %v350
      %v364 = vpop.f32.mrf.mxu0
      %v365 = vadd.f32 0.0, %v364
      %v366 = vpop.f32.mrf.mxu0
      %367 = vdwg.mxu0
      %v368 = vrcp.pop %v345
      %v369 = vmul.f32 %v365, %v368
      %v370 = vpack.c.bf16 %v369, %v369
      %372 = vrot.lane.b32.xlu0 %v370, 24
      %v373 = vpop.permute.xlu0 %372
      %vm375 = vcmask 257216
      %376 = vst.msk [vmem:[%s111] sm:$0xf] %vm375, %v373
      %p377 = scmp.lt.s32.totalorder %s12, 1
      %s378 = scalar_select %p377, %s12, 1
      %s379 = smul.addr %s378, 4
      %s380 = scalar_lea.vmem %s1, %s379
      // Predicated region
      $region25: #{attention_fwd.4} parent=23 // pred_check
        %p381 = pneg %p56
      $region26: #{attention_fwd.4} parent=23 // pred_check_branch
        %383 = sbr.rel (%p381) target = $region28
      $region27: #{attention_fwd.4} parent=23 // pred_region
        _
      $region28: #{attention_fwd.4} parent=23 // pred_fallthru
        _
    $region24: #{attention_fwd.4} parent=5 // pred_fallthru
      _
    %p384 = scmp.le.s32.totalorder 2, %s7
    // Predicated region
    $region29: #{attention_fwd.4} parent=5 // pred_check
      %p385 = pneg %p384
    $region30: #{attention_fwd.4} parent=5 // pred_check_branch
      %387 = sbr.rel (%p385) target = $region32
    $region31: #{attention_fwd.4} parent=5 // pred_region
      %s388 = ssub.s32 %s7, 2
      // Predicated region
      $region33: #{attention_fwd.4} parent=31 // pred_check
        %p389 = pneg %p62
      $region34: #{attention_fwd.4} parent=31 // pred_check_branch
        %391 = sbr.rel (%p389) target = $region36
      $region35: #{attention_fwd.4} parent=31 // pred_region
        %p392 = scmp.lt.s32.totalorder %s13, 1
        %s393 = scalar_select %p392, %s13, 1
        %s394 = smul.addr %s393, 4
        %s395 = scalar_lea.vmem %s1, %s394
      $region36: #{attention_fwd.4} parent=31 // pred_fallthru
        _
    $region32: #{attention_fwd.4} parent=5 // pred_fallthru
      _
  $region6: #{attention_fwd.4} parent=0 // loop_footer
    %s11 = sadd.s32 1, %s7
  $region7: #{attention_fwd.4} parent=0 // loop_footer_branch
    %6 = sbr.rel target = $region3
  $region8: #{attention_fwd.4} parent=0 // loop_exit
    _

</llo_original>
